<compile_context>
chip_gen: v7x
topology: tpu7x:2x2x1
jax: 0.10.0
libtpu: 0.0.40
codegen_flags: <defaults>
</compile_context>

<pallas_src>
import functools

import jax
import jax.numpy as jnp
from jax import lax
from jax.experimental import pallas as pl
from jax.experimental.pallas import tpu as pltpu


# ---------------------------------------------------------------------------
# per-generation configuration
# ---------------------------------------------------------------------------
def _round_up(x, m):
    return ((x + m - 1) // m) * m


def _tpu_config():
    """Tile sizes / VMEM limit chosen per TPU generation."""
    vmem_cap = 128 << 20
    try:
        vmem_cap = int(pltpu.get_tpu_info().vmem_capacity_bytes)
    except Exception:
        pass
    kind = ""
    try:
        kind = jax.devices()[0].device_kind.lower()
    except Exception:
        pass
    is_v5 = "v5" in kind
    is_v7 = "v7" in kind
    small_vmem = vmem_cap <= (64 << 20)              # e.g. v7x: 64 MiB / TC
    return {
        # leave headroom for double buffering / compiler scratch
        "vmem_limit": min(int(vmem_cap * 3 // 4), 100 << 20),
        # MXU M dim: 128 on v5e (4x128^2), 256 on v6e/v7x (2x256^2)
        "tile_b": 128 if is_v5 else 256,
        # vocab slab (encoder K, beta V, decode N); halve on small-VMEM parts
        "max_tile_v": 1024 if small_vmem else 2048,
        # number of TensorCores fed by the "parallel" batch axis
        "num_tc": 2 if is_v7 else 1,
    }


# ---------------------------------------------------------------------------
# Kernels 1a/1b: decoder topic-word factors (input independent, V-gridded)
# ---------------------------------------------------------------------------
def _beta_rowmax_kernel(phi_w_ref, psi_w_ref, phi_b_ref, rowmax_ref, *,
                        v_true, tile_v):
    v = pl.program_id(0)

    @pl.when(v == 0)
    def _():
        rowmax_ref[...] = jnp.full_like(rowmax_ref, -jnp.inf)

    # w[t, v] = sum_h phi_w[t, h] * psi_w[v, h] + phi_b[t]
    w = lax.dot_general(phi_w_ref[...], psi_w_ref[...],
                        (((1,), (1,)), ((), ())),
                        preferred_element_type=jnp.float32) + phi_b_ref[...]
    col = v * tile_v + lax.broadcasted_iota(jnp.int32, w.shape, 1)
    w = jnp.where(col < v_true, w, -jnp.inf)              # mask vocab padding
    rowmax_ref[...] = jnp.maximum(rowmax_ref[...],
                                  jnp.max(w, axis=1, keepdims=True))


def _beta_exp_kernel(phi_w_ref, psi_w_ref, phi_b_ref, rowmax_ref,
                     beta_ref, rowsum_ref, *, v_true, tile_v):
    v = pl.program_id(0)

    @pl.when(v == 0)
    def _():
        rowsum_ref[...] = jnp.zeros_like(rowsum_ref)

    w = lax.dot_general(phi_w_ref[...], psi_w_ref[...],
                        (((1,), (1,)), ((), ())),
                        preferred_element_type=jnp.float32) + phi_b_ref[...]
    ew = jnp.exp(w - rowmax_ref[...])
    col = v * tile_v + lax.broadcasted_iota(jnp.int32, w.shape, 1)
    ew = jnp.where(col < v_true, ew, 0.0)                  # mask vocab padding
    beta_ref[...] = ew.astype(beta_ref.dtype)              # bf16 store
    rowsum_ref[...] += jnp.sum(ew, axis=1, keepdims=True)  # exact f32 sums


def _compute_beta_parts(phi_w, psi_w_pad, phi_b, *, v_true, tile_v,
                        store_dtype, vmem_limit_bytes):
    """Returns (beta_exp(T, V_pad) in store_dtype, rowsum(T, 1) f32)."""
    T, H = phi_w.shape
    V_pad = psi_w_pad.shape[0]
    n_v = V_pad // tile_v
    phi_b_col = phi_b.reshape(T, 1)
    cparams = pltpu.CompilerParams(dimension_semantics=("arbitrary",),
                                   vmem_limit_bytes=vmem_limit_bytes)
    in_specs = [
        pl.BlockSpec((T, H),      lambda v: (0, 0)),   # phi.weight
        pl.BlockSpec((tile_v, H), lambda v: (v, 0)),   # psi.weight (V-streamed)
        pl.BlockSpec((T, 1),      lambda v: (0, 0)),   # phi.bias
    ]

    rowmax = pl.pallas_call(
        functools.partial(_beta_rowmax_kernel, v_true=v_true, tile_v=tile_v),
        out_shape=jax.ShapeDtypeStruct((T, 1), jnp.float32),
        grid_spec=pltpu.PrefetchScalarGridSpec(
            num_scalar_prefetch=0, grid=(n_v,),
            in_specs=in_specs,
            out_specs=pl.BlockSpec((T, 1), lambda v: (0, 0))),
        compiler_params=cparams,
    )(phi_w, psi_w_pad, phi_b_col)

    beta_exp, row_sum = pl.pallas_call(
        functools.partial(_beta_exp_kernel, v_true=v_true, tile_v=tile_v),
        out_shape=(jax.ShapeDtypeStruct((T, V_pad), store_dtype),
                   jax.ShapeDtypeStruct((T, 1), jnp.float32)),
        grid_spec=pltpu.PrefetchScalarGridSpec(
            num_scalar_prefetch=0, grid=(n_v,),
            in_specs=in_specs + [pl.BlockSpec((T, 1), lambda v: (0, 0))],
            out_specs=(pl.BlockSpec((T, tile_v), lambda v: (0, v)),
                       pl.BlockSpec((T, 1), lambda v: (0, 0)))),
        compiler_params=cparams,
    )(phi_w, psi_w_pad, phi_b_col, rowmax)
    return beta_exp, row_sum


# ---------------------------------------------------------------------------
# Kernel 2: K-streamed encoder + reparameterize + GSM softmax
# ---------------------------------------------------------------------------
def _encoder_theta_kernel(x_ref, w1_ref, eps_ref, b1_ref, wmulv_ref, bmulv_ref,
                          wgsm_ref, bgsm_ref, invl_ref,
                          theta_ref, mu_ref, logvar_ref, acc_ref, *,
                          num_topics):
    k = pl.program_id(1)

    @pl.when(k == 0)
    def _():
        # fold b1 into the accumulator init (saves an epilogue add)
        acc_ref[...] = jnp.broadcast_to(b1_ref[...], acc_ref.shape)

    # streamed encoder contraction over vocab (bf16 operands, f32 accumulation)
    acc_ref[...] += jnp.dot(x_ref[...], w1_ref[...],
                            preferred_element_type=jnp.float32)

    @pl.when(k == pl.num_programs(1) - 1)
    def _():
        T = num_topics
        hid = jnp.maximum(acc_ref[...], 0.0)                          # relu

        # fused fc_mu / fc_logvar : one small (H1, 2T) f32 matmul
        mulv = jnp.dot(hid, wmulv_ref[...],
                       preferred_element_type=jnp.float32) + bmulv_ref[...]
        mu = mulv[:, :T]
        logvar = mulv[:, T:2 * T]

        # reparameterize
        z = mu + eps_ref[...] * jnp.exp(logvar * 0.5)

        # theta = softmax(fc_gsm(z), axis=1), with beta's exact row
        # normalizer 1/rowsum folded into theta's columns
        g = jnp.dot(z, wgsm_ref[...],
                    preferred_element_type=jnp.float32) + bgsm_ref[...]
        g = g - jnp.max(g, axis=1, keepdims=True)
        eg = jnp.exp(g)
        inv_den = pl.reciprocal(jnp.sum(eg, axis=1, keepdims=True), approx=True)
        theta_ref[...] = (eg * inv_den * invl_ref[...]).astype(theta_ref.dtype)
        mu_ref[...] = mu
        logvar_ref[...] = logvar


# ---------------------------------------------------------------------------
# Kernel 3: V-tiled decode matmul (logits never held full-width in VMEM)
# ---------------------------------------------------------------------------
def _decode_kernel(theta_ref, beta_ref, logits_ref):
    logits_ref[...] = jnp.dot(theta_ref[...], beta_ref[...],
                              preferred_element_type=jnp.float32)


# ---------------------------------------------------------------------------
# wrapper
# ---------------------------------------------------------------------------
def chntm_forward(x, eps, params, *, matmul_dtype=jnp.bfloat16):
    """Fused forward pass: returns (logits, mu, logvar)."""
    B, V = x.shape
    H1 = params["w1"].shape[1]
    T = params["wmu"].shape[1]

    cfg = _tpu_config()
    vmem_limit = cfg["vmem_limit"]

    # vocab tiling shared by the encoder K loop, beta V slabs and decode N
    # slabs; V is padded to a tile multiple (zero pads are exact for x @ W1
    # and masked inside the beta kernels).
    tile_v = min(cfg["max_tile_v"], _round_up(V, 128))
    V_pad = _round_up(V, tile_v)

    # batch tiling; guarantee >= num_tc batch tiles on multi-TC parts (v7x)
    tile_b = cfg["tile_b"]
    if cfg["num_tc"] > 1:
        tile_b = min(tile_b, _round_up(-(-B // cfg["num_tc"]), 8))
    tile_b = max(8, min(tile_b, _round_up(B, 8)))
    B_pad = _round_up(B, tile_b)

    # ---- one-time decoder topic-word factors (V-gridded) --------------------
    psi_w = params["psi_w"]
    if V_pad != V:
        psi_w = jnp.pad(psi_w, ((0, V_pad - V), (0, 0)))
    beta_exp, row_sum = _compute_beta_parts(
        params["phi_w"], psi_w, params["phi_b"], v_true=V, tile_v=tile_v,
        store_dtype=matmul_dtype, vmem_limit_bytes=vmem_limit)
    inv_l = (1.0 / row_sum).reshape(1, T)       # exact beta normalizer, tiny

    # fuse fc_mu / fc_logvar weights into one (H1, 2T) matmul
    w_mulv = jnp.concatenate([params["wmu"], params["wlv"]], axis=1)
    b_mulv = jnp.concatenate([params["bmu"], params["blv"]], axis=1)

    # bf16 casts happen in the wrapper so the K-loop DMA bytes are halved
    x_c = x.astype(matmul_dtype)
    w1_c = params["w1"].astype(matmul_dtype)
    eps_c = eps
    if V_pad != V:
        x_c = jnp.pad(x_c, ((0, 0), (0, V_pad - V)))
        w1_c = jnp.pad(w1_c, ((0, V_pad - V), (0, 0)))
    if B_pad != B:
        x_c = jnp.pad(x_c, ((0, B_pad - B), (0, 0)))
        eps_c = jnp.pad(eps_c, ((0, B_pad - B), (0, 0)))

    nb, nk = B_pad // tile_b, V_pad // tile_v

    # ---- kernel 2: encoder ---------------------------------------------------
    # NOTE: constant-index operands are all tiny now that beta is not resident
    # here, so default double buffering is acceptable (VMEM no longer scales
    # with V in this kernel).
    # TODO(synk): on v5e, raise x/W1 to pipeline_mode=pl.Buffered(3) if
    # profiling shows exposed DMA in the K loop.
    enc_in_specs = [
        pl.BlockSpec((tile_b, tile_v), lambda b, k: (b, k)),   # x  (K-streamed)
        pl.BlockSpec((tile_v, H1),     lambda b, k: (k, 0)),   # W1 (K-streamed)
        pl.BlockSpec((tile_b, T),      lambda b, k: (b, 0)),   # eps
        pl.BlockSpec((1, H1),          lambda b, k: (0, 0)),   # b1
        pl.BlockSpec((H1, 2 * T),      lambda b, k: (0, 0)),   # W_mu|logvar
        pl.BlockSpec((1, 2 * T),       lambda b, k: (0, 0)),   # b_mu|logvar
        pl.BlockSpec((T, T),           lambda b, k: (0, 0)),   # W_gsm
        pl.BlockSpec((1, T),           lambda b, k: (0, 0)),   # b_gsm
        pl.BlockSpec((1, T),           lambda b, k: (0, 0)),   # 1 / beta rowsum
    ]
    enc_out_specs = (
        pl.BlockSpec((tile_b, T), lambda b, k: (b, 0)),        # theta_scaled
        pl.BlockSpec((tile_b, T), lambda b, k: (b, 0)),        # mu
        pl.BlockSpec((tile_b, T), lambda b, k: (b, 0)),        # logvar
    )
    theta_s, mu, logvar = pl.pallas_call(
        functools.partial(_encoder_theta_kernel, num_topics=T),
        out_shape=(jax.ShapeDtypeStruct((B_pad, T), matmul_dtype),
                   jax.ShapeDtypeStruct((B_pad, T), jnp.float32),
                   jax.ShapeDtypeStruct((B_pad, T), jnp.float32)),
        grid_spec=pltpu.PrefetchScalarGridSpec(
            num_scalar_prefetch=0, grid=(nb, nk),
            in_specs=enc_in_specs, out_specs=enc_out_specs,
            scratch_shapes=[pltpu.VMEM((tile_b, H1), jnp.float32)]),
        compiler_params=pltpu.CompilerParams(
            dimension_semantics=("parallel", "arbitrary"),
            vmem_limit_bytes=vmem_limit),
    )(x_c, w1_c, eps_c, params["b1"], w_mulv, b_mulv,
      params["wgsm"], params["bgsm"], inv_l)

    # ---- kernel 3: V-tiled decode, logits = theta_scaled @ exp(w - rowmax) ---
    logits = pl.pallas_call(
        _decode_kernel,
        out_shape=jax.ShapeDtypeStruct((B_pad, V_pad), jnp.float32),
        grid_spec=pltpu.PrefetchScalarGridSpec(
            num_scalar_prefetch=0, grid=(nb, nk),
            in_specs=[pl.BlockSpec((tile_b, T), lambda b, n: (b, 0)),
                      pl.BlockSpec((T, tile_v), lambda b, n: (0, n))],
            out_specs=pl.BlockSpec((tile_b, tile_v), lambda b, n: (b, n))),
        compiler_params=pltpu.CompilerParams(
            dimension_semantics=("parallel", "parallel"),
            vmem_limit_bytes=vmem_limit),
    )(theta_s, beta_exp)

    if B_pad != B or V_pad != V:
        logits = logits[:B, :V]
    if B_pad != B:
        mu, logvar = mu[:B], logvar[:B]
    return logits, mu, logvar


# ---------------------------------------------------------------------------
# parameter construction + plain-JAX reference
# ---------------------------------------------------------------------------
def make_params(key, vocab_size, enc_hidden, num_topics, hidden_dim,
                n_topic_root, embed_dim):
    """Deterministic synthetic parameter init (mirrors module __init__ shapes).
    Linear weights stored as (in_dim, out_dim); biases as (1, out_dim)."""
    ks = jax.random.split(key, 12)

    def lin_w(k, fan_in, fan_out):
        return (jax.random.normal(k, (fan_in, fan_out), jnp.float32)
                * (1.0 / jnp.sqrt(fan_in)))

    return {
        # encoder: encode_dims = [V, H1, T] -> single Linear(V, H1)
        "w1": lin_w(ks[0], vocab_size, enc_hidden),
        "b1": 0.01 * jax.random.normal(ks[1], (1, enc_hidden), jnp.float32),
        # fc_mu: Linear(H1, T)
        "wmu": lin_w(ks[2], enc_hidden, num_topics),
        "bmu": 0.01 * jax.random.normal(ks[3], (1, num_topics), jnp.float32),
        # fc_logvar: Linear(H1, T) -- nn.init.constant_(0.0) on weight & bias
        "wlv": jnp.zeros((enc_hidden, num_topics), jnp.float32),
        "blv": jnp.zeros((1, num_topics), jnp.float32),
        # fc_gsm: Linear(T, T)
        "wgsm": lin_w(ks[4], num_topics, num_topics),
        "bgsm": 0.01 * jax.random.normal(ks[5], (1, num_topics), jnp.float32),
        # psi: Linear(hidden_dim, V) -> psi.weight is (V, hidden_dim)
        "psi_w": jax.random.normal(ks[6], (vocab_size, hidden_dim), jnp.float32)
                 * (1.0 / jnp.sqrt(hidden_dim)),
        # phi: Linear(hidden_dim, T) -> phi.weight is (T, hidden_dim)
        "phi_w": jax.random.normal(ks[7], (num_topics, hidden_dim), jnp.float32)
                 * (1.0 / jnp.sqrt(hidden_dim)),
        "phi_b": 0.01 * jax.random.normal(ks[8], (num_topics,), jnp.float32),
        # C_HNTM-level parameters (not used in forward; kept for shape fidelity)
        "gmm_pi": jnp.zeros((n_topic_root,), jnp.float32),
        "gmm_mu": jax.random.normal(ks[9], (n_topic_root, embed_dim), jnp.float32),
        "gmm_logvar": jax.random.normal(ks[10], (n_topic_root, embed_dim), jnp.float32),
        "dependency_w": jax.random.normal(ks[11], (n_topic_root, num_topics), jnp.float32)
                        * (1.0 / jnp.sqrt(n_topic_root)),
    }


def reference_forward(x, eps, p):
    """Plain-JAX f32 reference of the same forward pass (sanity check)."""
    hid = jnp.maximum(x @ p["w1"] + p["b1"], 0.0)
    mu = hid @ p["wmu"] + p["bmu"]
    logvar = hid @ p["wlv"] + p["blv"]
    z = mu + eps * jnp.exp(logvar / 2)
    theta = jax.nn.softmax(z @ p["wgsm"] + p["bgsm"], axis=1)
    w = p["psi_w"] @ p["phi_w"].T + p["phi_b"][None, :]   # (V, T)
    beta = jax.nn.softmax(w, axis=0).T                    # (T, V)
    logits = theta @ beta
    return logits, mu, logvar


if __name__ == "__main__":
    # small shapes consistent with the module
    batch = 8
    vocab_size = 256
    enc_hidden = 128          # encode_dims = [256, 128, 16]
    num_topics = 16           # n_topic_leaf
    hidden_dim = 64           # word-embedding dim shared by psi/phi
    n_topic_root = 8
    embed_dim = 32

    key = jax.random.PRNGKey(0)
    k_params, k_x, k_eps = jax.random.split(key, 3)

    params = make_params(k_params, vocab_size, enc_hidden, num_topics,
                         hidden_dim, n_topic_root, embed_dim)

    # bag-of-words-like nonnegative input
    x = jnp.abs(jax.random.normal(k_x, (batch, vocab_size), jnp.float32))
    # reparameterization noise (torch.randn_like(mu)) generated deterministically
    eps = jax.random.normal(k_eps, (batch, num_topics), jnp.float32)

    logits, mu, logvar = chntm_forward(x, eps, params)   # bf16 matmuls (default)
    jax.block_until_ready((logits, mu, logvar))

    # sanity check against the plain-JAX f32 reference
    ref_logits, ref_mu, ref_logvar = reference_forward(x, eps, params)
    assert logits.shape == (batch, vocab_size)
    assert mu.shape == (batch, num_topics)
    assert logvar.shape == (batch, num_topics)
    # logvar is exactly zero (fc_logvar weights/bias initialized to 0)
    assert jnp.allclose(logvar, ref_logvar, atol=1e-6, rtol=1e-6)
    # bf16 operands on the x@W1 stream -> loosened tolerances vs. f32 reference
    assert jnp.allclose(mu, ref_mu, atol=5e-2, rtol=5e-2), \
        float(jnp.max(jnp.abs(mu - ref_mu)))
    assert jnp.allclose(logits, ref_logits, atol=3e-4, rtol=1e-1), \
        float(jnp.max(jnp.abs(logits - ref_logits)))

    print("KERNEL_OK")
</pallas_src>

<mosaic_0001>
module attributes {stable_mosaic.version = 11 : i64} {
  func.func @_beta_rowmax_kernel(%arg0: i32, %arg1: memref<16x64xf32, #tpu.memory_space<vmem>>, %arg2: memref<256x64xf32, #tpu.memory_space<vmem>>, %arg3: memref<16x1xf32, #tpu.memory_space<vmem>>, %arg4: memref<16x1xf32, #tpu.memory_space<vmem>>) attributes {dimension_semantics = [#tpu.dimension_semantics<arbitrary>], iteration_bounds = array<i64: 1>, scalar_prefetch = 0 : i64, scratch_operands = 0 : i64, tpu.core_type = #tpu.core_type<tc>, window_params = [{pipeline_mode = #tpu.pipeline_mode<synchronous>, transform_indices = @transform_0, window_bounds = array<i64: 16, 64>}, {transform_indices = @transform_1, window_bounds = array<i64: 256, 64>}, {pipeline_mode = #tpu.pipeline_mode<synchronous>, transform_indices = @transform_2, window_bounds = array<i64: 16, 1>}, {pipeline_mode = #tpu.pipeline_mode<synchronous>, transform_indices = @transform_3, window_bounds = array<i64: 16, 1>}]} {
    %c0_i32 = arith.constant 0 : i32
    %0 = arith.cmpi eq, %arg0, %c0_i32 : i32
    %1 = arith.extui %0 : i1 to i32
    %c0_i32_0 = arith.constant 0 : i32
    %2 = arith.cmpi ne, %1, %c0_i32_0 : i32
    scf.if %2 {
      %cst_13 = arith.constant 0xFF800000 : f32
      %22 = vector.broadcast %cst_13 : f32 to vector<16x1xf32>
      %c0_14 = arith.constant 0 : index
      %c0_15 = arith.constant 0 : index
      %23 = vector.load %arg4[%c0_14, %c0_15] : memref<16x1xf32, #tpu.memory_space<vmem>>, vector<16x1xf32>
      tpu.vector_store %arg4[%c0_14, %c0_15], %22 {strides = array<i32>} : memref<16x1xf32, #tpu.memory_space<vmem>>, vector<16x1xf32>,
    } else {
    }
    %c0 = arith.constant 0 : index
    %c0_1 = arith.constant 0 : index
    %3 = vector.load %arg1[%c0, %c0_1] : memref<16x64xf32, #tpu.memory_space<vmem>>, vector<16x64xf32>
    %c0_2 = arith.constant 0 : index
    %c0_3 = arith.constant 0 : index
    %4 = vector.load %arg2[%c0_2, %c0_3] : memref<256x64xf32, #tpu.memory_space<vmem>>, vector<256x64xf32>
    %cst = arith.constant dense<0.000000e+00> : vector<16x256xf32>
    %5 = tpu.matmul %3, %4, %cst {dimension_numbers = #tpu.dot_dimension_numbers<[1], [1], [0], [0], [0, 0, 1, 0], [], []>} : vector<16x64xf32>, vector<256x64xf32>, vector<16x256xf32> -> vector<16x256xf32>
    %c0_4 = arith.constant 0 : index
    %c0_5 = arith.constant 0 : index
    %6 = vector.load %arg3[%c0_4, %c0_5] : memref<16x1xf32, #tpu.memory_space<vmem>>, vector<16x1xf32>
    %7 = vector.broadcast %6 : vector<16x1xf32> to vector<16x256xf32>
    %8 = arith.addf %5, %7 : vector<16x256xf32>
    %c256_i32 = arith.constant 256 : i32
    %9 = arith.muli %arg0, %c256_i32 : i32
    %10 = tpu.iota {dimensions = array<i32: 1>} : vector<16x256xi32>
    %11 = vector.broadcast %9 : i32 to vector<16x256xi32>
    %12 = arith.addi %11, %10 : vector<16x256xi32>
    %c256_i32_6 = arith.constant 256 : i32
    %13 = vector.broadcast %c256_i32_6 : i32 to vector<16x256xi32>
    %14 = arith.cmpi slt, %12, %13 : vector<16x256xi32>
    %cst_7 = arith.constant 0xFF800000 : f32
    %15 = vector.broadcast %cst_7 : f32 to vector<16x256xf32>
    %16 = arith.select %14, %8, %15 : vector<16x256xi1>, vector<16x256xf32>
    %c0_8 = arith.constant 0 : index
    %c0_9 = arith.constant 0 : index
    %17 = vector.load %arg4[%c0_8, %c0_9] : memref<16x1xf32, #tpu.memory_space<vmem>>, vector<16x1xf32>
    %cst_10 = arith.constant dense<0xFF800000> : vector<16xf32>
    %18 = vector.multi_reduction <maximumf>, %16, %cst_10 [1] : vector<16x256xf32> to vector<16xf32>
    %19 = vector.shape_cast %18 : vector<16xf32> to vector<16x1xf32>
    %20 = arith.maximumf %17, %19 : vector<16x1xf32>
    %c0_11 = arith.constant 0 : index
    %c0_12 = arith.constant 0 : index
    %21 = vector.load %arg4[%c0_11, %c0_12] : memref<16x1xf32, #tpu.memory_space<vmem>>, vector<16x1xf32>
    tpu.vector_store %arg4[%c0_11, %c0_12], %20 {strides = array<i32>} : memref<16x1xf32, #tpu.memory_space<vmem>>, vector<16x1xf32>,
    return
  }
  func.func @transform_0(%arg0: i32) -> (i32, i32) {
    %c0_i32 = arith.constant 0 : i32
    %c0_i32_0 = arith.constant 0 : i32
    %c0_i32_1 = arith.constant 0 : i32
    return %c0_i32, %c0_i32_0 : i32, i32
  }
  func.func @transform_1(%arg0: i32) -> (i32, i32) {
    %c0_i32 = arith.constant 0 : i32
    %c0_i32_0 = arith.constant 0 : i32
    return %arg0, %c0_i32 : i32, i32
  }
  func.func @transform_2(%arg0: i32) -> (i32, i32) {
    %c0_i32 = arith.constant 0 : i32
    %c0_i32_0 = arith.constant 0 : i32
    %c0_i32_1 = arith.constant 0 : i32
    return %c0_i32, %c0_i32_0 : i32, i32
  }
  func.func @transform_3(%arg0: i32) -> (i32, i32) {
    %c0_i32 = arith.constant 0 : i32
    %c0_i32_0 = arith.constant 0 : i32
    %c0_i32_1 = arith.constant 0 : i32
    return %c0_i32, %c0_i32_0 : i32, i32
  }
}

</mosaic_0001>

<llo_original>
// kernel: tpu_custom_call.1
$region0: #{tpu_custom_call.1}
  #allocation0 [shape = 'u32[]', space=smem, size = 0x4, offset = 0x4, fixed_abs, tag = 'smem constant byte address 0x4 - core index']
  #allocation1 [shape = 'u32[144,128]{1,0:T(1,128)}', space=vmem, size = 0x12000, scoped, tag = 'internal scratch']
  %s0 = inlined_call_operand.hbm [shape: f32[16,64], index: 0, kind: input, shape index: {}]
  %s1 = inlined_call_operand.hbm [shape: f32[256,64], index: 1, kind: input, shape index: {}]
  %s2 = inlined_call_operand.hbm [shape: f32[16,1], index: 2, kind: input, shape index: {}]
  %s3 = inlined_call_operand.hbm [shape: f32[16,1], index: 3, kind: output, shape index: {}]
  %s4 = sld [smem:[#allocation0]]
  $region38: #{tpu_custom_call.1} parent=0
    _
  %s6 = ssub.s32 1, %s4
  %s7 = scalar_select 0, %s6, %s4
  $region1: #{tpu_custom_call.1} parent=0
    #allocation2 [shape = 'u8[8192]{0}', space=vmem, size = 0x2000, scoped, tag = 'input window, operand 0, single buffered']
    #allocation3 [shape = 's32[1]{0}', space=sflag, size = 0x4, scoped, tag = 'scoped memory for tpu_custom_call.1']
    #allocation4 [shape = 's32[1]{0}', space=sflag, size = 0x4, scoped, tag = 'scoped memory for tpu_custom_call.1']
    #allocation5 [shape = 'u8[131072]{0}', space=vmem, size = 0x20000, scoped, tag = 'input window, operand 1, single buffered']
    #allocation6 [shape = 's32[1]{0}', space=sflag, size = 0x4, scoped, tag = 'scoped memory for tpu_custom_call.1']
    #allocation7 [shape = 'u8[8192]{0}', space=vmem, size = 0x2000, scoped, tag = 'input window, operand 2, single buffered']
    #allocation8 [shape = 'u8[8192]{0}', space=vmem, size = 0x2000, scoped, tag = 'output window, operand 0, single buffered']
    %8 = vsyncpa [#allocation3], 0
    %9 = vsyncpa [#allocation6], 0
    %10 = vsyncpa [#allocation4], 0
    // Predicated region
    $region2: #{tpu_custom_call.1} parent=1 // pred_check
      _
    $region3: #{tpu_custom_call.1} parent=1 // pred_check_branch
      %12 = sbr.rel (0) target = $region5
    $region4: #{tpu_custom_call.1} parent=1 // pred_region
      %s14 = ssub.s32 256, 256
      %15 = vsyncadd [#allocation3], %s14
      %s16 = sshll.u32 [#allocation2], 4
      %s17 = int_to_ptr.vmem [resolvable:$true] %s16
      %22 = dma.hbm_to_vmem [thread:$0]  %s0, 256, %s17, [#allocation3], 128, 128, 8
    $region5: #{tpu_custom_call.1} parent=1 // pred_fallthru
      _
    // Predicated region
    $region6: #{tpu_custom_call.1} parent=1 // pred_check
      _
    $region7: #{tpu_custom_call.1} parent=1 // pred_check_branch
      %24 = sbr.rel (0) target = $region9
    $region8: #{tpu_custom_call.1} parent=1 // pred_region
      %s26 = ssub.s32 4096, 4096
      %27 = vsyncadd [#allocation6], %s26
      %s28 = sshll.u32 [#allocation5], 4
      %s29 = int_to_ptr.vmem [resolvable:$true] %s28
      %34 = dma.hbm_to_vmem [thread:$0]  %s1, 4096, %s29, [#allocation6], 128, 128, 8
    $region9: #{tpu_custom_call.1} parent=1 // pred_fallthru
      _
    // Predicated region
    $region10: #{tpu_custom_call.1} parent=1 // pred_check
      _
    $region11: #{tpu_custom_call.1} parent=1 // pred_check_branch
      %36 = sbr.rel (0) target = $region13
    $region12: #{tpu_custom_call.1} parent=1 // pred_region
      %s38 = ssub.s32 256, 256
      %39 = vsyncadd [#allocation6], %s38
      %s40 = sshll.u32 [#allocation7], 4
      %s41 = int_to_ptr.vmem [resolvable:$true] %s40
      %46 = dma.hbm_to_vmem [thread:$0]  %s2, 256, %s41, [#allocation6], 128, 128, 8
    $region13: #{tpu_custom_call.1} parent=1 // pred_fallthru
      _
    // Predicated region
    $region14: #{tpu_custom_call.1} parent=1 // pred_check
      _
    $region15: #{tpu_custom_call.1} parent=1 // pred_check_branch
      %48 = sbr.rel (0) target = $region17
    $region16: #{tpu_custom_call.1} parent=1 // pred_region
      %49 = dma.done [#allocation3], 256
    $region17: #{tpu_custom_call.1} parent=1 // pred_fallthru
      _
    // Predicated region
    $region18: #{tpu_custom_call.1} parent=1 // pred_check
      _
    $region19: #{tpu_custom_call.1} parent=1 // pred_check_branch
      %51 = sbr.rel (0) target = $region21
    $region20: #{tpu_custom_call.1} parent=1 // pred_region
      %52 = dma.done [#allocation6], 4096
    $region21: #{tpu_custom_call.1} parent=1 // pred_fallthru
      _
    // Predicated region
    $region22: #{tpu_custom_call.1} parent=1 // pred_check
      _
    $region23: #{tpu_custom_call.1} parent=1 // pred_check_branch
      %54 = sbr.rel (0) target = $region25
    $region24: #{tpu_custom_call.1} parent=1 // pred_region
      %55 = dma.done [#allocation6], 256
    $region25: #{tpu_custom_call.1} parent=1 // pred_fallthru
      _
    %p56 = scmp.eq.s32.totalorder 0, 0
    // Predicated region
    $region26: #{tpu_custom_call.1} parent=1 // pred_check
      %p57 = pneg %p56
    $region27: #{tpu_custom_call.1} parent=1 // pred_check_branch
      %59 = sbr.rel (%p57) target = $region29
    $region28: #{tpu_custom_call.1} parent=1 // pred_region
      %vm60 = vcmask 7168
      %61 = vst.msk [vmem:[#allocation8] sm:$0xff] %vm60, -inf
      %62 = vst.msk [vmem:[#allocation8 + $0x8] sm:$0xff] %vm60, -inf
    $region29: #{tpu_custom_call.1} parent=1 // pred_fallthru
      _
    %v63 = vld [vmem:[#allocation2] sm:$0xff]
    %v64 = vld [vmem:[#allocation2 + $0x8] sm:$0xff]
    %v65 = vld [vmem:[#allocation5] sm:$0xff]
    %v66 = vld [vmem:[#allocation5 + $0x8] sm:$0xff]
    %v67 = vld [vmem:[#allocation5 + $0x10] sm:$0xff]
    %v68 = vld [vmem:[#allocation5 + $0x18] sm:$0xff]
    %v69 = vld [vmem:[#allocation5 + $0x20] sm:$0xff]
    %v70 = vld [vmem:[#allocation5 + $0x28] sm:$0xff]
    %v71 = vld [vmem:[#allocation5 + $0x30] sm:$0xff]
    %v72 = vld [vmem:[#allocation5 + $0x38] sm:$0xff]
    %v73 = vld [vmem:[#allocation5 + $0x40] sm:$0xff]
    %v74 = vld [vmem:[#allocation5 + $0x48] sm:$0xff]
    %v75 = vld [vmem:[#allocation5 + $0x50] sm:$0xff]
    %v76 = vld [vmem:[#allocation5 + $0x58] sm:$0xff]
    %v77 = vld [vmem:[#allocation5 + $0x60] sm:$0xff]
    %v78 = vld [vmem:[#allocation5 + $0x68] sm:$0xff]
    %v79 = vld [vmem:[#allocation5 + $0x70] sm:$0xff]
    %v80 = vld [vmem:[#allocation5 + $0x78] sm:$0xff]
    %v81 = vld [vmem:[#allocation5 + $0x80] sm:$0xff]
    %v82 = vld [vmem:[#allocation5 + $0x88] sm:$0xff]
    %v83 = vld [vmem:[#allocation5 + $0x90] sm:$0xff]
    %v84 = vld [vmem:[#allocation5 + $0x98] sm:$0xff]
    %v85 = vld [vmem:[#allocation5 + $0xa0] sm:$0xff]
    %v86 = vld [vmem:[#allocation5 + $0xa8] sm:$0xff]
    %v87 = vld [vmem:[#allocation5 + $0xb0] sm:$0xff]
    %v88 = vld [vmem:[#allocation5 + $0xb8] sm:$0xff]
    %v89 = vld [vmem:[#allocation5 + $0xc0] sm:$0xff]
    %v90 = vld [vmem:[#allocation5 + $0xc8] sm:$0xff]
    %v91 = vld [vmem:[#allocation5 + $0xd0] sm:$0xff]
    %v92 = vld [vmem:[#allocation5 + $0xd8] sm:$0xff]
    %v93 = vld [vmem:[#allocation5 + $0xe0] sm:$0xff]
    %v94 = vld [vmem:[#allocation5 + $0xe8] sm:$0xff]
    %v95 = vld [vmem:[#allocation5 + $0xf0] sm:$0xff]
    %v96 = vld [vmem:[#allocation5 + $0xf8] sm:$0xff]
    %v97 = vld [vmem:[#allocation7] sm:$0xff]
    %v98 = vld [vmem:[#allocation7 + $0x8] sm:$0xff]
    %100 = vset.pattern.permute.xlu0 0
    %101 = vperm.xlu0 %100, %v97
    %v102 = vpop.permute.xlu0 %101
    %105 = vset.pattern.permute.xlu0 0
    %106 = vperm.xlu0 %105, %v98
    %v107 = vpop.permute.xlu0 %106
    %vm109 = vcmask 523264
    %v111 = vsel %vm109, %v63, 0
    %v114 = vsel %vm109, %v64, 0
    %v117 = vsel %vm109, %v65, 0
    %v120 = vsel %vm109, %v66, 0
    %v123 = vsel %vm109, %v67, 0
    %v126 = vsel %vm109, %v68, 0
    %v129 = vsel %vm109, %v69, 0
    %v132 = vsel %vm109, %v70, 0
    %v135 = vsel %vm109, %v71, 0
    %v138 = vsel %vm109, %v72, 0
    %v141 = vsel %vm109, %v73, 0
    %v144 = vsel %vm109, %v74, 0
    %v147 = vsel %vm109, %v75, 0
    %v150 = vsel %vm109, %v76, 0
    %v153 = vsel %vm109, %v77, 0
    %v156 = vsel %vm109, %v78, 0
    %v159 = vsel %vm109, %v79, 0
    %v162 = vsel %vm109, %v80, 0
    %v165 = vsel %vm109, %v81, 0
    %v168 = vsel %vm109, %v82, 0
    %v171 = vsel %vm109, %v83, 0
    %v174 = vsel %vm109, %v84, 0
    %v177 = vsel %vm109, %v85, 0
    %v180 = vsel %vm109, %v86, 0
    %v183 = vsel %vm109, %v87, 0
    %v186 = vsel %vm109, %v88, 0
    %v189 = vsel %vm109, %v89, 0
    %v192 = vsel %vm109, %v90, 0
    %v195 = vsel %vm109, %v91, 0
    %v198 = vsel %vm109, %v92, 0
    %v201 = vsel %vm109, %v93, 0
    %v204 = vsel %vm109, %v94, 0
    %v207 = vsel %vm109, %v95, 0
    %v210 = vsel %vm109, %v96, 0
    %212 = vmatprep.subr.mxu0 0.0
    %213 = vmatpush1.xpose.msra.mxu0 %v117
    %214 = vmatprep.subr.mxu0 0.0
    %215 = vmatpush1.xpose.msra.mxu0 %v120
    %216 = vmatprep.subr.mxu0 0.0
    %217 = vmatpush1.xpose.msra.mxu0 %v123
    %218 = vmatprep.subr.mxu0 0.0
    %219 = vmatpush1.xpose.msra.mxu0 %v126
    %220 = vmatprep.subr.mxu0 0.0
    %221 = vmatpush1.xpose.msra.mxu0 %v129
    %222 = vmatprep.subr.mxu0 0.0
    %223 = vmatpush1.xpose.msra.mxu0 %v132
    %224 = vmatprep.subr.mxu0 0.0
    %225 = vmatpush1.xpose.msra.mxu0 %v135
    %226 = vmatprep.subr.mxu0 0.0
    %227 = vmatpush1.xpose.msra.mxu0 %v138
    %228 = vmatprep.subr.mxu0 0.0
    %229 = vmatpush1.xpose.msra.mxu0 %v141
    %230 = vmatprep.subr.mxu0 0.0
    %231 = vmatpush1.xpose.msra.mxu0 %v144
    %232 = vmatprep.subr.mxu0 0.0
    %233 = vmatpush1.xpose.msra.mxu0 %v147
    %234 = vmatprep.subr.mxu0 0.0
    %235 = vmatpush1.xpose.msra.mxu0 %v150
    %236 = vmatprep.subr.mxu0 0.0
    %237 = vmatpush1.xpose.msra.mxu0 %v153
    %238 = vmatprep.subr.mxu0 0.0
    %239 = vmatpush1.xpose.msra.mxu0 %v156
    %240 = vmatprep.subr.mxu0 0.0
    %241 = vmatpush1.xpose.msra.mxu0 %v159
    %242 = vmatprep.subr.mxu0 0.0
    %243 = vmatpush1.xpose.msra.mxu0 %v162
    %244 = vmatprep.subr.mxu0 0.0
    %245 = vmatpush1.xpose.msra.mxu0 %v165
    %246 = vmatprep.subr.mxu0 0.0
    %247 = vmatpush1.xpose.msra.mxu0 %v168
    %248 = vmatprep.subr.mxu0 0.0
    %249 = vmatpush1.xpose.msra.mxu0 %v171
    %250 = vmatprep.subr.mxu0 0.0
    %251 = vmatpush1.xpose.msra.mxu0 %v174
    %252 = vmatprep.subr.mxu0 0.0
    %253 = vmatpush1.xpose.msra.mxu0 %v177
    %254 = vmatprep.subr.mxu0 0.0
    %255 = vmatpush1.xpose.msra.mxu0 %v180
    %256 = vmatprep.subr.mxu0 0.0
    %257 = vmatpush1.xpose.msra.mxu0 %v183
    %258 = vmatprep.subr.mxu0 0.0
    %259 = vmatpush1.xpose.msra.mxu0 %v186
    %260 = vmatprep.subr.mxu0 0.0
    %261 = vmatpush1.xpose.msra.mxu0 %v189
    %262 = vmatprep.subr.mxu0 0.0
    %263 = vmatpush1.xpose.msra.mxu0 %v192
    %264 = vmatprep.subr.mxu0 0.0
    %265 = vmatpush1.xpose.msra.mxu0 %v195
    %266 = vmatprep.subr.mxu0 0.0
    %267 = vmatpush1.xpose.msra.mxu0 %v198
    %268 = vmatprep.subr.mxu0 0.0
    %269 = vmatpush1.xpose.msra.mxu0 %v201
    %270 = vmatprep.subr.mxu0 0.0
    %271 = vmatpush1.xpose.msra.mxu0 %v204
    %272 = vmatprep.subr.mxu0 0.0
    %273 = vmatpush1.xpose.msra.mxu0 %v207
    %274 = vmatprep.subr.mxu0 0.0
    %275 = vmatpush1.xpose.msra.mxu0 %v210
    %276 = vmatprep.mubr.f32.mxu0 0.0
    %277 = vmatmul.mubr.f32.gmra.mrb[0].mxu0 %v111
    %v278 = vpop.f32.mrb[0].mxu0
    %v279 = vadd.f32 %v102, %v278
    %v280 = vpop.f32.mrb[0].mxu0
    %v281 = vadd.f32 %v102, %v280
    %282 = vmatprep.mubr.f32.mxu0 0.0
    %283 = vmatmul.mubr.f32.gmra.mrb[0].mxu0 %v114
    %v284 = vpop.f32.mrb[0].mxu0
    %v285 = vadd.f32 %v107, %v284
    %v286 = vpop.f32.mrb[0].mxu0
    %v287 = vadd.f32 %v107, %v286
    %288 = vdwg.mxu0
    %s289 = smul.u32 0, 256
    %v290 = vlaneseq
    %v291 = vand.u32 %v290, 127
    %v292 = vadd.s32 %v291, 128
    %v293 = vstv %s289
    %v294 = vadd.s32 %v293, %v291
    %v295 = vadd.s32 %v293, %v292
    %vm296 = vcmp.lt.s32.totalorder %v294, 256
    %vm297 = vcmp.lt.s32.totalorder %v295, 256
    %v298 = vsel %vm296, %v279, -inf
    %v299 = vsel %vm297, %v281, -inf
    %v300 = vsel %vm296, %v285, -inf
    %v301 = vsel %vm297, %v287, -inf
    %v302 = vld [vmem:[#allocation8] sm:$0xff]
    %v303 = vld [vmem:[#allocation8 + $0x8] sm:$0xff]
    %v304 = vmax.f32 %v298, %v299
    %305 = vmax.xlane.f32.xlu0 %v304
    %v306 = vpop.xlane.xlu0 %305
    %v307 = vmax.f32 %v300, %v301
    %308 = vmax.xlane.f32.xlu0 %v307
    %v309 = vpop.xlane.xlu0 %308
    %v310 = vmax.f32 %v302, %v306
    %v311 = vmax.f32 %v303, %v309
    %vm312 = vcmask 7168
    %313 = vst.msk [vmem:[#allocation8] sm:$0xff] %vm312, %v310
    %314 = vst.msk [vmem:[#allocation8 + $0x8] sm:$0xff] %vm312, %v311
    // Predicated region
    $region30: #{tpu_custom_call.1} parent=1 // pred_check
      _
    $region31: #{tpu_custom_call.1} parent=1 // pred_check_branch
      %316 = sbr.rel (0) target = $region33
    $region32: #{tpu_custom_call.1} parent=1 // pred_region
      %s318 = ssub.s32 256, 256
      %319 = vsyncadd [#allocation4], %s318
      %s320 = sshll.u32 [#allocation8], 4
      %s321 = int_to_ptr.vmem [resolvable:$true] %s320
      %326 = dma.vmem_to_hbm [thread:$0]  %s321, 256, %s3, [#allocation4], 128, 128, 8
    $region33: #{tpu_custom_call.1} parent=1 // pred_fallthru
      _
    // Predicated region
    $region34: #{tpu_custom_call.1} parent=1 // pred_check
      _
    $region35: #{tpu_custom_call.1} parent=1 // pred_check_branch
      %328 = sbr.rel (0) target = $region37
    $region36: #{tpu_custom_call.1} parent=1 // pred_region
      %329 = dma.done [#allocation4], 256
    $region37: #{tpu_custom_call.1} parent=1 // pred_fallthru
      _
    %330 = vsyncpa [#allocation3], 1
    %331 = vsyncpa [#allocation6], 1
    %332 = vsyncpa [#allocation4], 1

</llo_original>
